<compile_context>
chip_gen: v7x
topology: tpu7x:2x2x1
jax: 0.10.0
libtpu: 0.0.40
codegen_flags: <defaults>
</compile_context>

<pallas_src>
import functools

import jax
import jax.numpy as jnp
from jax.experimental import pallas as pl
from jax.experimental.pallas import tpu as pltpu

_LANE = 128      # vreg lane width / MXU minor dim
_SUBLANE = 8     # f32 sublane granule


def _round_up(x, m):
    return ((x + m - 1) // m) * m


def _vmem_capacity_bytes():
    """Per-core VMEM capacity (v5e/v6e: 128 MiB, v7x: 64 MiB per TC)."""
    try:
        return int(pltpu.get_tpu_info().vmem_capacity_bytes)
    except Exception:
        return 64 * 2**20  # conservative fallback (v7x per-TC)


def _default_block_b(batch):
    """Batch tile: target >= ~8 grid steps so each TensorCore (v7x has 2) gets
    several steps of DMA/compute overlap; sublane-aligned, lane-aligned when
    large, capped at 1024 rows."""
    target_steps = 8
    blk = pl.cdiv(batch, target_steps)
    blk = _round_up(max(blk, _SUBLANE), _SUBLANE)
    if blk > _LANE:
        blk = _round_up(blk, _LANE)
    return int(min(1024, blk))


def mlp_kernel(x_ref, w1_ref, b1_ref, w2_ref, b2_ref, w3_ref, b3_ref,
               w4_ref, b4_ref, o_ref):
    """Fused 4-layer MLP forward for one (block_b, in_dim) batch tile.

    x arrives f32 and is cast to bf16 in VMEM; weights are bf16 (MXU fast
    path); accumulation + bias + ReLU are f32 (v5e has no bf16 VALU); hidden
    activations are downcast to bf16 before feeding the next matmul.
    """
    h = x_ref[...].astype(jnp.bfloat16)
    layers = ((w1_ref, b1_ref, True),
              (w2_ref, b2_ref, True),
              (w3_ref, b3_ref, True),
              (w4_ref, b4_ref, False))
    for w_ref, b_ref, relu in layers:
        acc = jnp.dot(h, w_ref[...], preferred_element_type=jnp.float32)
        acc = acc + b_ref[...]
        if relu:
            h = jnp.maximum(acc, 0.0).astype(jnp.bfloat16)
        else:
            o_ref[...] = acc.astype(o_ref.dtype)


def prepare_params(params):
    """Pad ONLY the hidden dim (n_units) and cast weights to bf16.

    Zero padding is exact: padded hidden columns stay exactly 0 through
    bias+ReLU, and the padded rows of the following weight contribute nothing.
    Biases may be (fan_out,) or (1, fan_out).  Accuracy note: bf16 matmul
    inputs with f32 accumulation — not bit-exact vs f32 nn.Linear.
    """
    def _bias(b):
        return jnp.asarray(b, jnp.float32).reshape(1, -1)

    w1 = jnp.asarray(params["w1"], jnp.float32)
    w2 = jnp.asarray(params["w2"], jnp.float32)
    w3 = jnp.asarray(params["w3"], jnp.float32)
    w4 = jnp.asarray(params["w4"], jnp.float32)
    n_units = w1.shape[1]
    # v6e/v7x MXU is 2x256^2: once the model is compute-bound, 256-aligned
    # hidden dims keep the systolic array full; 128 otherwise (also fine on
    # v5e's 4x128^2 MXU).
    gran = 256 if n_units >= 512 else _LANE
    n_pad = _round_up(n_units, gran)
    dn = n_pad - n_units
    return {
        "w1": jnp.pad(w1, ((0, 0), (0, dn))).astype(jnp.bfloat16),
        "b1": jnp.pad(_bias(params["b1"]), ((0, 0), (0, dn))),
        "w2": jnp.pad(w2, ((0, dn), (0, dn))).astype(jnp.bfloat16),
        "b2": jnp.pad(_bias(params["b2"]), ((0, 0), (0, dn))),
        "w3": jnp.pad(w3, ((0, dn), (0, dn))).astype(jnp.bfloat16),
        "b3": jnp.pad(_bias(params["b3"]), ((0, 0), (0, dn))),
        "w4": jnp.pad(w4, ((0, dn), (0, 0))).astype(jnp.bfloat16),
        "b4": _bias(params["b4"]),
    }


@functools.partial(jax.jit, static_argnames=("block_b",))
def simple_mlp_forward(x, prepared, block_b=None):
    """x: (B, in_dim) f32. prepared: output of prepare_params. Returns (B, out_dim) f32."""
    B, in_dim = x.shape
    assert prepared["w1"].shape[0] == in_dim
    n_pad = prepared["w2"].shape[0]
    out_dim = prepared["w4"].shape[1]

    if block_b is None:
        block_b = _default_block_b(B)
    block_b = _round_up(block_b, _SUBLANE)
    B_pad = _round_up(max(B, block_b), block_b)
    grid = (B_pad // block_b,)

    # Only the batch axis is padded; no dtype cast / lane padding of x in HBM.
    x_p = x if B_pad == B else jnp.pad(x, ((0, B_pad - B), (0, 0)))

    # ---- VMEM budget (generation-aware) ----
    w_bytes = sum(prepared[f"w{i}"].size for i in range(1, 5)) * 2   # bf16
    b_bytes = sum(prepared[f"b{i}"].size for i in range(1, 5)) * 4   # f32
    # Single-buffer the (constant-index) weights once they are big enough to
    # matter; at tiny widths the default double-buffering is harmless.
    single_buffer_weights = (w_bytes + b_bytes) > (8 << 20)
    wbuf = 1 if single_buffer_weights else 2
    resident_bytes = wbuf * (w_bytes + b_bytes)
    tile_bytes = 2 * block_b * (in_dim + out_dim) * 4      # double-buffered x/out (f32)
    interm_bytes = 4 * block_b * n_pad * 4                 # live f32/bf16 hiddens (generous)
    working = resident_bytes + tile_bytes + interm_bytes

    cap = _vmem_capacity_bytes()
    if working > int(0.8 * cap):
        # TODO(synk): add a hidden-dim (K) tiled fallback (second grid axis or
        # pltpu.emit_pipeline over weight slabs + f32 accumulator) for n_units
        # large enough that resident weights exceed per-core VMEM.
        raise NotImplementedError(
            f"resident MLP weights ({working/2**20:.1f} MiB) exceed the VMEM "
            f"budget ({0.8*cap/2**20:.1f} MiB); hidden-dim tiling not implemented")
    vmem_limit = int(max(16 << 20, min(int(0.8 * cap), 2 * working + (4 << 20))))

    def resident(shape):
        # Weights/biases: whole-array block, same block every grid step
        # (VMEM-resident across the batch loop).  Single-buffer when large so
        # the footprint fits v7x's 64 MiB as n_units scales.
        if single_buffer_weights:
            return pl.BlockSpec(shape, lambda i: (0, 0),
                                pipeline_mode=pl.Buffered(1))
        return pl.BlockSpec(shape, lambda i: (0, 0))

    # Advisory cost estimate for XLA's scheduler.
    flops = 2 * B_pad * (in_dim * n_pad + 2 * n_pad * n_pad + n_pad * out_dim)
    bytes_accessed = (B_pad * in_dim * 4 + B_pad * out_dim * 4
                      + w_bytes + b_bytes)
    cost = pl.CostEstimate(flops=flops, transcendentals=0,
                           bytes_accessed=bytes_accessed)

    out = pl.pallas_call(
        mlp_kernel,
        out_shape=jax.ShapeDtypeStruct((B_pad, out_dim), jnp.float32),
        grid_spec=pltpu.PrefetchScalarGridSpec(
            num_scalar_prefetch=0,
            grid=grid,
            in_specs=[
                # x tile: true feature width (full-dim block), f32 stream.
                # NOTE(v5e): if profiling shows exposed x DMA, this spec can be
                # deepened with pipeline_mode=pl.Buffered(3) at negligible VMEM cost.
                pl.BlockSpec((block_b, in_dim), lambda i: (i, 0)),
                resident((in_dim, n_pad)), resident((1, n_pad)),    # l1
                resident((n_pad, n_pad)), resident((1, n_pad)),     # l2
                resident((n_pad, n_pad)), resident((1, n_pad)),     # l3
                resident((n_pad, out_dim)), resident((1, out_dim)), # l4
            ],
            # Output keeps the true out_dim (full-dim block): for small out_dim
            # the masked vst cost is negligible vs the ~32x HBM write savings.
            out_specs=pl.BlockSpec((block_b, out_dim), lambda i: (i, 0)),
        ),
        compiler_params=pltpu.CompilerParams(
            dimension_semantics=("parallel",),
            vmem_limit_bytes=vmem_limit,
        ),
        cost_estimate=cost,
    )(x_p,
      prepared["w1"], prepared["b1"],
      prepared["w2"], prepared["b2"],
      prepared["w3"], prepared["b3"],
      prepared["w4"], prepared["b4"])

    return out[:B]


def init_params(key, in_dim, out_dim, n_units):
    """nn.Linear-style init U(-1/sqrt(fan_in), 1/sqrt(fan_in)); weights already
    transposed to (fan_in, fan_out); biases as (1, fan_out); all f32."""
    dims = [(in_dim, n_units), (n_units, n_units),
            (n_units, n_units), (n_units, out_dim)]
    params = {}
    for idx, (fi, fo) in enumerate(dims, start=1):
        key, kw, kb = jax.random.split(key, 3)
        bound = 1.0 / jnp.sqrt(jnp.float32(fi))
        params[f"w{idx}"] = jax.random.uniform(kw, (fi, fo), jnp.float32, -bound, bound)
        params[f"b{idx}"] = jax.random.uniform(kb, (1, fo), jnp.float32, -bound, bound)
    return params


def reference_forward(x, params):
    h = jnp.maximum(x @ params["w1"] + params["b1"], 0.0)
    h = jnp.maximum(h @ params["w2"] + params["b2"], 0.0)
    h = jnp.maximum(h @ params["w3"] + params["b3"], 0.0)
    return h @ params["w4"] + params["b4"]


if __name__ == "__main__":
    key = jax.random.PRNGKey(0)
    B, in_dim, out_dim, n_units = 256, 16, 4, 32

    key, kx = jax.random.split(key)
    x = jax.random.normal(kx, (B, in_dim), jnp.float32)
    params = init_params(key, in_dim, out_dim, n_units)
    prepared = prepare_params(params)

    y = simple_mlp_forward(x, prepared)
    y = jax.block_until_ready(y)

    y_ref = reference_forward(x, params)
    assert y.shape == (B, out_dim)
    max_err = float(jnp.max(jnp.abs(y - y_ref)))
    # bf16 matmul inputs with f32 accumulation -> loosened tolerance vs f32 ref.
    assert jnp.allclose(y, y_ref, atol=5e-2, rtol=5e-2), (
        f"mismatch vs JAX reference (max abs err {max_err:.4e})")
    print("KERNEL_OK")
</pallas_src>

<mosaic_0001>
module attributes {stable_mosaic.version = 11 : i64} {
  func.func @mlp_kernel(%arg0: i32, %arg1: memref<32x16xf32, #tpu.memory_space<vmem>>, %arg2: memref<16x128xbf16, #tpu.memory_space<vmem>>, %arg3: memref<1x128xf32, #tpu.memory_space<vmem>>, %arg4: memref<128x128xbf16, #tpu.memory_space<vmem>>, %arg5: memref<1x128xf32, #tpu.memory_space<vmem>>, %arg6: memref<128x128xbf16, #tpu.memory_space<vmem>>, %arg7: memref<1x128xf32, #tpu.memory_space<vmem>>, %arg8: memref<128x4xbf16, #tpu.memory_space<vmem>>, %arg9: memref<1x4xf32, #tpu.memory_space<vmem>>, %arg10: memref<32x4xf32, #tpu.memory_space<vmem>>) attributes {dimension_semantics = [#tpu.dimension_semantics<parallel>], iteration_bounds = array<i64: 8>, scalar_prefetch = 0 : i64, scratch_operands = 0 : i64, tpu.core_type = #tpu.core_type<tc>, window_params = [{transform_indices = @transform_0, window_bounds = array<i64: 32, 16>}, {pipeline_mode = #tpu.pipeline_mode<synchronous>, transform_indices = @transform_1, window_bounds = array<i64: 16, 128>}, {pipeline_mode = #tpu.pipeline_mode<synchronous>, transform_indices = @transform_2, window_bounds = array<i64: 1, 128>}, {pipeline_mode = #tpu.pipeline_mode<synchronous>, transform_indices = @transform_3, window_bounds = array<i64: 128, 128>}, {pipeline_mode = #tpu.pipeline_mode<synchronous>, transform_indices = @transform_4, window_bounds = array<i64: 1, 128>}, {pipeline_mode = #tpu.pipeline_mode<synchronous>, transform_indices = @transform_5, window_bounds = array<i64: 128, 128>}, {pipeline_mode = #tpu.pipeline_mode<synchronous>, transform_indices = @transform_6, window_bounds = array<i64: 1, 128>}, {pipeline_mode = #tpu.pipeline_mode<synchronous>, transform_indices = @transform_7, window_bounds = array<i64: 128, 4>}, {pipeline_mode = #tpu.pipeline_mode<synchronous>, transform_indices = @transform_8, window_bounds = array<i64: 1, 4>}, {transform_indices = @transform_9, window_bounds = array<i64: 32, 4>}]} {
    %c0 = arith.constant 0 : index
    %c0_0 = arith.constant 0 : index
    %0 = vector.load %arg1[%c0, %c0_0] : memref<32x16xf32, #tpu.memory_space<vmem>>, vector<32x16xf32>
    %1 = arith.truncf %0 : vector<32x16xf32> to vector<32x16xbf16>
    %c0_1 = arith.constant 0 : index
    %c0_2 = arith.constant 0 : index
    %2 = vector.load %arg2[%c0_1, %c0_2] : memref<16x128xbf16, #tpu.memory_space<vmem>>, vector<16x128xbf16>
    %cst = arith.constant dense<0.000000e+00> : vector<32x128xf32>
    %3 = tpu.matmul %1, %2, %cst {dimension_numbers = #tpu.dot_dimension_numbers<[1], [0], [0], [1], [0, 0, 1, 1], [], []>} : vector<32x16xbf16>, vector<16x128xbf16>, vector<32x128xf32> -> vector<32x128xf32>
    %c0_3 = arith.constant 0 : index
    %c0_4 = arith.constant 0 : index
    %4 = vector.load %arg3[%c0_3, %c0_4] : memref<1x128xf32, #tpu.memory_space<vmem>>, vector<1x128xf32>
    %5 = vector.broadcast %4 : vector<1x128xf32> to vector<32x128xf32>
    %6 = arith.addf %3, %5 : vector<32x128xf32>
    %cst_5 = arith.constant 0.000000e+00 : f32
    %7 = vector.broadcast %cst_5 : f32 to vector<32x128xf32>
    %8 = arith.maximumf %6, %7 : vector<32x128xf32>
    %9 = arith.truncf %8 : vector<32x128xf32> to vector<32x128xbf16>
    %c0_6 = arith.constant 0 : index
    %c0_7 = arith.constant 0 : index
    %10 = vector.load %arg4[%c0_6, %c0_7] : memref<128x128xbf16, #tpu.memory_space<vmem>>, vector<128x128xbf16>
    %cst_8 = arith.constant dense<0.000000e+00> : vector<32x128xf32>
    %11 = tpu.matmul %9, %10, %cst_8 {dimension_numbers = #tpu.dot_dimension_numbers<[1], [0], [0], [1], [0, 0, 1, 1], [], []>} : vector<32x128xbf16>, vector<128x128xbf16>, vector<32x128xf32> -> vector<32x128xf32>
    %c0_9 = arith.constant 0 : index
    %c0_10 = arith.constant 0 : index
    %12 = vector.load %arg5[%c0_9, %c0_10] : memref<1x128xf32, #tpu.memory_space<vmem>>, vector<1x128xf32>
    %13 = vector.broadcast %12 : vector<1x128xf32> to vector<32x128xf32>
    %14 = arith.addf %11, %13 : vector<32x128xf32>
    %cst_11 = arith.constant 0.000000e+00 : f32
    %15 = vector.broadcast %cst_11 : f32 to vector<32x128xf32>
    %16 = arith.maximumf %14, %15 : vector<32x128xf32>
    %17 = arith.truncf %16 : vector<32x128xf32> to vector<32x128xbf16>
    %c0_12 = arith.constant 0 : index
    %c0_13 = arith.constant 0 : index
    %18 = vector.load %arg6[%c0_12, %c0_13] : memref<128x128xbf16, #tpu.memory_space<vmem>>, vector<128x128xbf16>
    %cst_14 = arith.constant dense<0.000000e+00> : vector<32x128xf32>
    %19 = tpu.matmul %17, %18, %cst_14 {dimension_numbers = #tpu.dot_dimension_numbers<[1], [0], [0], [1], [0, 0, 1, 1], [], []>} : vector<32x128xbf16>, vector<128x128xbf16>, vector<32x128xf32> -> vector<32x128xf32>
    %c0_15 = arith.constant 0 : index
    %c0_16 = arith.constant 0 : index
    %20 = vector.load %arg7[%c0_15, %c0_16] : memref<1x128xf32, #tpu.memory_space<vmem>>, vector<1x128xf32>
    %21 = vector.broadcast %20 : vector<1x128xf32> to vector<32x128xf32>
    %22 = arith.addf %19, %21 : vector<32x128xf32>
    %cst_17 = arith.constant 0.000000e+00 : f32
    %23 = vector.broadcast %cst_17 : f32 to vector<32x128xf32>
    %24 = arith.maximumf %22, %23 : vector<32x128xf32>
    %25 = arith.truncf %24 : vector<32x128xf32> to vector<32x128xbf16>
    %c0_18 = arith.constant 0 : index
    %c0_19 = arith.constant 0 : index
    %26 = vector.load %arg8[%c0_18, %c0_19] : memref<128x4xbf16, #tpu.memory_space<vmem>>, vector<128x4xbf16>
    %cst_20 = arith.constant dense<0.000000e+00> : vector<32x4xf32>
    %27 = tpu.matmul %25, %26, %cst_20 {dimension_numbers = #tpu.dot_dimension_numbers<[1], [0], [0], [1], [0, 0, 1, 1], [], []>} : vector<32x128xbf16>, vector<128x4xbf16>, vector<32x4xf32> -> vector<32x4xf32>
    %c0_21 = arith.constant 0 : index
    %c0_22 = arith.constant 0 : index
    %28 = vector.load %arg9[%c0_21, %c0_22] : memref<1x4xf32, #tpu.memory_space<vmem>>, vector<1x4xf32>
    %29 = vector.broadcast %28 : vector<1x4xf32> to vector<32x4xf32>
    %30 = arith.addf %27, %29 : vector<32x4xf32>
    %c0_23 = arith.constant 0 : index
    %c0_24 = arith.constant 0 : index
    %31 = vector.load %arg10[%c0_23, %c0_24] : memref<32x4xf32, #tpu.memory_space<vmem>>, vector<32x4xf32>
    tpu.vector_store %arg10[%c0_23, %c0_24], %30 {strides = array<i32>} : memref<32x4xf32, #tpu.memory_space<vmem>>, vector<32x4xf32>,
    return
  }
  func.func @transform_0(%arg0: i32) -> (i32, i32) {
    %c0_i32 = arith.constant 0 : i32
    %c0_i32_0 = arith.constant 0 : i32
    return %arg0, %c0_i32 : i32, i32
  }
  func.func @transform_1(%arg0: i32) -> (i32, i32) {
    %c0_i32 = arith.constant 0 : i32
    %c0_i32_0 = arith.constant 0 : i32
    %c0_i32_1 = arith.constant 0 : i32
    return %c0_i32, %c0_i32_0 : i32, i32
  }
  func.func @transform_2(%arg0: i32) -> (i32, i32) {
    %c0_i32 = arith.constant 0 : i32
    %c0_i32_0 = arith.constant 0 : i32
    %c0_i32_1 = arith.constant 0 : i32
    return %c0_i32, %c0_i32_0 : i32, i32
  }
  func.func @transform_3(%arg0: i32) -> (i32, i32) {
    %c0_i32 = arith.constant 0 : i32
    %c0_i32_0 = arith.constant 0 : i32
    %c0_i32_1 = arith.constant 0 : i32
    return %c0_i32, %c0_i32_0 : i32, i32
  }
  func.func @transform_4(%arg0: i32) -> (i32, i32) {
    %c0_i32 = arith.constant 0 : i32
    %c0_i32_0 = arith.constant 0 : i32
    %c0_i32_1 = arith.constant 0 : i32
    return %c0_i32, %c0_i32_0 : i32, i32
  }
  func.func @transform_5(%arg0: i32) -> (i32, i32) {
    %c0_i32 = arith.constant 0 : i32
    %c0_i32_0 = arith.constant 0 : i32
    %c0_i32_1 = arith.constant 0 : i32
    return %c0_i32, %c0_i32_0 : i32, i32
  }
  func.func @transform_6(%arg0: i32) -> (i32, i32) {
    %c0_i32 = arith.constant 0 : i32
    %c0_i32_0 = arith.constant 0 : i32
    %c0_i32_1 = arith.constant 0 : i32
    return %c0_i32, %c0_i32_0 : i32, i32
  }
  func.func @transform_7(%arg0: i32) -> (i32, i32) {
    %c0_i32 = arith.constant 0 : i32
    %c0_i32_0 = arith.constant 0 : i32
    %c0_i32_1 = arith.constant 0 : i32
    return %c0_i32, %c0_i32_0 : i32, i32
  }
  func.func @transform_8(%arg0: i32) -> (i32, i32) {
    %c0_i32 = arith.constant 0 : i32
    %c0_i32_0 = arith.constant 0 : i32
    %c0_i32_1 = arith.constant 0 : i32
    return %c0_i32, %c0_i32_0 : i32, i32
  }
  func.func @transform_9(%arg0: i32) -> (i32, i32) {
    %c0_i32 = arith.constant 0 : i32
    %c0_i32_0 = arith.constant 0 : i32
    return %arg0, %c0_i32 : i32, i32
  }
}

</mosaic_0001>

<llo_original>
// kernel: simple_mlp_forward.1
$region0: #{simple_mlp_forward.1}
  #allocation0 [shape = 'u32[]', space=smem, size = 0x4, offset = 0x4, fixed_abs, tag = 'smem constant byte address 0x4 - core index']
  #allocation1 [shape = 'u32[144,128]{1,0:T(1,128)}', space=vmem, size = 0x12000, scoped, tag = 'internal scratch']
  %s0 = inlined_call_operand.vmem [shape: f32[256,16], index: 0, kind: input, shape index: {}]
  %s1 = inlined_call_operand.vmem [shape: bf16[16,128], index: 1, kind: input, shape index: {}]
  %s2 = inlined_call_operand.vmem [shape: f32[1,128], index: 2, kind: input, shape index: {}]
  %s3 = inlined_call_operand.vmem [shape: bf16[128,128], index: 3, kind: input, shape index: {}]
  %s4 = inlined_call_operand.vmem [shape: f32[1,128], index: 4, kind: input, shape index: {}]
  %s5 = inlined_call_operand.vmem [shape: bf16[128,128], index: 5, kind: input, shape index: {}]
  %s6 = inlined_call_operand.vmem [shape: f32[1,128], index: 6, kind: input, shape index: {}]
  %s7 = inlined_call_operand.vmem [shape: bf16[128,4], index: 7, kind: input, shape index: {}]
  %s8 = inlined_call_operand.vmem [shape: f32[1,4], index: 8, kind: input, shape index: {}]
  %s9 = inlined_call_operand.vmem [shape: f32[256,4], index: 9, kind: output, shape index: {}]
  %s10 = sld [smem:[#allocation0]]
  $region69: #{simple_mlp_forward.1} parent=0
    _
  %s12 = ssub.s32 1, %s10
  %s13 = scalar_select 0, %s12, %s10
  loop: start=0, step=1, limit=10
  $region2: #{simple_mlp_forward.1} parent=0 // loop_pre_header
    _
  $region3: #{simple_mlp_forward.1} parent=0 // loop_header
    %s15 = sphi 0, %s19
    %p16 = scmp.ge.s32.totalorder %s15, 10
    %s25 = sphi 0, %s27
    %s28 = sphi 0, %s25
    %s29 = sphi 0, %s28
    %s45 = sphi 0, %s29
    %s49 = sphi 0, %s49
    %s51 = sphi 0, %s49
    %s52 = sphi 0, %s51
    %s66 = sphi 0, %s52
    %s70 = sphi 0, %s70
    %s72 = sphi 0, %s70
    %s73 = sphi 0, %s72
    %s87 = sphi 0, %s73
    %s91 = sphi 0, %s91
    %s93 = sphi 0, %s91
    %s94 = sphi 0, %s93
    %s108 = sphi 0, %s94
    %s112 = sphi 0, %s112
    %s114 = sphi 0, %s112
    %s115 = sphi 0, %s114
    %s129 = sphi 0, %s115
    %s133 = sphi 0, %s133
    %s135 = sphi 0, %s133
    %s136 = sphi 0, %s135
    %s150 = sphi 0, %s136
    %s154 = sphi 0, %s154
    %s156 = sphi 0, %s154
    %s157 = sphi 0, %s156
    %s171 = sphi 0, %s157
    %s175 = sphi 0, %s175
    %s177 = sphi 0, %s175
    %s178 = sphi 0, %s177
    %s192 = sphi 0, %s178
    %s196 = sphi 0, %s196
    %s198 = sphi 0, %s196
    %s199 = sphi 0, %s198
    %s213 = sphi 0, %s199
    %s219 = sphi 0, %s221
    %s222 = sphi 0, %s219
    %s223 = sphi 0, %s222
    %s239 = sphi 0, %s223
  $region4: #{simple_mlp_forward.1} parent=0 // loop_header_branch
    %18 = sbr.rel (%p16) target = $region8
  $region5: #{simple_mlp_forward.1} parent=0 // loop_body
    %s20 = ssub.s32 %s15, 1
    %s21 = ssub.s32 %s15, 2
    %s22 = sadd.s32 %s15, 1
    %s23 = ssub.s32 %s15, %s22
    %p24 = scmp.eq.s32.totalorder %s23, 0
    %s26 = sadd.s32 %s25, 1
    %s27 = scalar_select %p24, %s25, %s26
    %p30 = pneg %p24
    %p31 = scmp.eq.s32.totalorder %s15, 7
    %p32 = por %p30, %p31
    %p33 = scmp.ne.s32.totalorder %s25, %s28
    %p34 = scmp.eq.s32.totalorder %s15, 0
    %p35 = por %p33, %p34
    %p36 = scmp.ne.s32.totalorder %s25, %s28
    %p37 = scmp.eq.s32.totalorder %s20, 7
    %p38 = por %p36, %p37
    %p39 = scmp.ne.s32.totalorder %s28, %s29
    %p40 = scmp.eq.s32.totalorder %s20, 0
    %p41 = por %p39, %p40
    %p42 = scmp.ne.s32.totalorder %s28, %s29
    %p43 = scmp.eq.s32.totalorder %s21, 7
    %p44 = por %p42, %p43
    %p46 = scmp.ne.s32.totalorder %s29, %s45
    %p47 = scmp.eq.s32.totalorder %s21, 0
    %p48 = por %p46, %p47
    %s50 = sadd.s32 %s49, 1
    %p53 = scmp.eq.s32.totalorder %s15, 7
    %p54 = scmp.ne.s32.totalorder %s49, %s51
    %p55 = scmp.eq.s32.totalorder %s15, 0
    %p56 = por %p54, %p55
    %p57 = scmp.ne.s32.totalorder %s49, %s51
    %p58 = scmp.eq.s32.totalorder %s20, 7
    %p59 = por %p57, %p58
    %p60 = scmp.ne.s32.totalorder %s51, %s52
    %p61 = scmp.eq.s32.totalorder %s20, 0
    %p62 = por %p60, %p61
    %p63 = scmp.ne.s32.totalorder %s51, %s52
    %p64 = scmp.eq.s32.totalorder %s21, 7
    %p65 = por %p63, %p64
    %p67 = scmp.ne.s32.totalorder %s52, %s66
    %p68 = scmp.eq.s32.totalorder %s21, 0
    %p69 = por %p67, %p68
    %s71 = sadd.s32 %s70, 1
    %p74 = scmp.eq.s32.totalorder %s15, 7
    %p75 = scmp.ne.s32.totalorder %s70, %s72
    %p76 = scmp.eq.s32.totalorder %s15, 0
    %p77 = por %p75, %p76
    %p78 = scmp.ne.s32.totalorder %s70, %s72
    %p79 = scmp.eq.s32.totalorder %s20, 7
    %p80 = por %p78, %p79
    %p81 = scmp.ne.s32.totalorder %s72, %s73
    %p82 = scmp.eq.s32.totalorder %s20, 0
    %p83 = por %p81, %p82
    %p84 = scmp.ne.s32.totalorder %s72, %s73
    %p85 = scmp.eq.s32.totalorder %s21, 7
    %p86 = por %p84, %p85
    %p88 = scmp.ne.s32.totalorder %s73, %s87
    %p89 = scmp.eq.s32.totalorder %s21, 0
    %p90 = por %p88, %p89
    %s92 = sadd.s32 %s91, 1
    %p95 = scmp.eq.s32.totalorder %s15, 7
    %p96 = scmp.ne.s32.totalorder %s91, %s93
    %p97 = scmp.eq.s32.totalorder %s15, 0
    %p98 = por %p96, %p97
    %p99 = scmp.ne.s32.totalorder %s91, %s93
    %p100 = scmp.eq.s32.totalorder %s20, 7
    %p101 = por %p99, %p100
    %p102 = scmp.ne.s32.totalorder %s93, %s94
    %p103 = scmp.eq.s32.totalorder %s20, 0
    %p104 = por %p102, %p103
    %p105 = scmp.ne.s32.totalorder %s93, %s94
    %p106 = scmp.eq.s32.totalorder %s21, 7
    %p107 = por %p105, %p106
    %p109 = scmp.ne.s32.totalorder %s94, %s108
    %p110 = scmp.eq.s32.totalorder %s21, 0
    %p111 = por %p109, %p110
    %s113 = sadd.s32 %s112, 1
    %p116 = scmp.eq.s32.totalorder %s15, 7
    %p117 = scmp.ne.s32.totalorder %s112, %s114
    %p118 = scmp.eq.s32.totalorder %s15, 0
    %p119 = por %p117, %p118
    %p120 = scmp.ne.s32.totalorder %s112, %s114
    %p121 = scmp.eq.s32.totalorder %s20, 7
    %p122 = por %p120, %p121
    %p123 = scmp.ne.s32.totalorder %s114, %s115
    %p124 = scmp.eq.s32.totalorder %s20, 0
    %p125 = por %p123, %p124
    %p126 = scmp.ne.s32.totalorder %s114, %s115
    %p127 = scmp.eq.s32.totalorder %s21, 7
    %p128 = por %p126, %p127
    %p130 = scmp.ne.s32.totalorder %s115, %s129
    %p131 = scmp.eq.s32.totalorder %s21, 0
    %p132 = por %p130, %p131
    %s134 = sadd.s32 %s133, 1
    %p137 = scmp.eq.s32.totalorder %s15, 7
    %p138 = scmp.ne.s32.totalorder %s133, %s135
    %p139 = scmp.eq.s32.totalorder %s15, 0
    %p140 = por %p138, %p139
    %p141 = scmp.ne.s32.totalorder %s133, %s135
    %p142 = scmp.eq.s32.totalorder %s20, 7
    %p143 = por %p141, %p142
    %p144 = scmp.ne.s32.totalorder %s135, %s136
    %p145 = scmp.eq.s32.totalorder %s20, 0
    %p146 = por %p144, %p145
    %p147 = scmp.ne.s32.totalorder %s135, %s136
    %p148 = scmp.eq.s32.totalorder %s21, 7
    %p149 = por %p147, %p148
    %p151 = scmp.ne.s32.totalorder %s136, %s150
    %p152 = scmp.eq.s32.totalorder %s21, 0
    %p153 = por %p151, %p152
    %s155 = sadd.s32 %s154, 1
    %p158 = scmp.eq.s32.totalorder %s15, 7
    %p159 = scmp.ne.s32.totalorder %s154, %s156
    %p160 = scmp.eq.s32.totalorder %s15, 0
    %p161 = por %p159, %p160
    %p162 = scmp.ne.s32.totalorder %s154, %s156
    %p163 = scmp.eq.s32.totalorder %s20, 7
    %p164 = por %p162, %p163
    %p165 = scmp.ne.s32.totalorder %s156, %s157
    %p166 = scmp.eq.s32.totalorder %s20, 0
    %p167 = por %p165, %p166
    %p168 = scmp.ne.s32.totalorder %s156, %s157
    %p169 = scmp.eq.s32.totalorder %s21, 7
    %p170 = por %p168, %p169
    %p172 = scmp.ne.s32.totalorder %s157, %s171
    %p173 = scmp.eq.s32.totalorder %s21, 0
    %p174 = por %p172, %p173
    %s176 = sadd.s32 %s175, 1
    %p179 = scmp.eq.s32.totalorder %s15, 7
    %p180 = scmp.ne.s32.totalorder %s175, %s177
    %p181 = scmp.eq.s32.totalorder %s15, 0
    %p182 = por %p180, %p181
    %p183 = scmp.ne.s32.totalorder %s175, %s177
    %p184 = scmp.eq.s32.totalorder %s20, 7
    %p185 = por %p183, %p184
    %p186 = scmp.ne.s32.totalorder %s177, %s178
    %p187 = scmp.eq.s32.totalorder %s20, 0
    %p188 = por %p186, %p187
    %p189 = scmp.ne.s32.totalorder %s177, %s178
    %p190 = scmp.eq.s32.totalorder %s21, 7
    %p191 = por %p189, %p190
    %p193 = scmp.ne.s32.totalorder %s178, %s192
    %p194 = scmp.eq.s32.totalorder %s21, 0
    %p195 = por %p193, %p194
    %s197 = sadd.s32 %s196, 1
    %p200 = scmp.eq.s32.totalorder %s15, 7
    %p201 = scmp.ne.s32.totalorder %s196, %s198
    %p202 = scmp.eq.s32.totalorder %s15, 0
    %p203 = por %p201, %p202
    %p204 = scmp.ne.s32.totalorder %s196, %s198
    %p205 = scmp.eq.s32.totalorder %s20, 7
    %p206 = por %p204, %p205
    %p207 = scmp.ne.s32.totalorder %s198, %s199
    %p208 = scmp.eq.s32.totalorder %s20, 0
    %p209 = por %p207, %p208
    %p210 = scmp.ne.s32.totalorder %s198, %s199
    %p211 = scmp.eq.s32.totalorder %s21, 7
    %p212 = por %p210, %p211
    %p214 = scmp.ne.s32.totalorder %s199, %s213
    %p215 = scmp.eq.s32.totalorder %s21, 0
    %p216 = por %p214, %p215
    %s217 = ssub.s32 %s15, %s22
    %p218 = scmp.eq.s32.totalorder %s217, 0
    %s220 = sadd.s32 %s219, 1
    %s221 = scalar_select %p218, %s219, %s220
    %p224 = pneg %p218
    %p225 = scmp.eq.s32.totalorder %s15, 7
    %p226 = por %p224, %p225
    %p227 = scmp.ne.s32.totalorder %s219, %s222
    %p228 = scmp.eq.s32.totalorder %s15, 0
    %p229 = por %p227, %p228
    %p230 = scmp.ne.s32.totalorder %s219, %s222
    %p231 = scmp.eq.s32.totalorder %s20, 7
    %p232 = por %p230, %p231
    %p233 = scmp.ne.s32.totalorder %s222, %s223
    %p234 = scmp.eq.s32.totalorder %s20, 0
    %p235 = por %p233, %p234
    %p236 = scmp.ne.s32.totalorder %s222, %s223
    %p237 = scmp.eq.s32.totalorder %s21, 7
    %p238 = por %p236, %p237
    %p240 = scmp.ne.s32.totalorder %s223, %s239
    %p241 = scmp.eq.s32.totalorder %s21, 0
    %p242 = por %p240, %p241
    %p243 = scmp.le.s32.totalorder 1, %s15
    %p244 = scmp.lt.s32.totalorder %s15, 9
    %p245 = pnand %p243, %p244
    %p246 = pneg %p245
    // Predicated region
    $region9: #{simple_mlp_forward.1} parent=5 // pred_check
      _
    $region10: #{simple_mlp_forward.1} parent=5 // pred_check_branch
      %248 = sbr.rel (%p245) target = $region12
    $region11: #{simple_mlp_forward.1} parent=5 // pred_region
      %s249 = ssub.s32 %s15, 1
      // Predicated region
      $region13: #{simple_mlp_forward.1} parent=11 // pred_check
        %p250 = pneg %p62
      $region14: #{simple_mlp_forward.1} parent=11 // pred_check_branch
        %252 = sbr.rel (%p250) target = $region16
      $region15: #{simple_mlp_forward.1} parent=11 // pred_region
        _
      $region16: #{simple_mlp_forward.1} parent=11 // pred_fallthru
        _
      // Predicated region
      $region17: #{simple_mlp_forward.1} parent=11 // pred_check
        %p253 = pneg %p83
      $region18: #{simple_mlp_forward.1} parent=11 // pred_check_branch
        %255 = sbr.rel (%p253) target = $region20
      $region19: #{simple_mlp_forward.1} parent=11 // pred_region
        _
      $region20: #{simple_mlp_forward.1} parent=11 // pred_fallthru
        _
      // Predicated region
      $region21: #{simple_mlp_forward.1} parent=11 // pred_check
        %p256 = pneg %p104
      $region22: #{simple_mlp_forward.1} parent=11 // pred_check_branch
        %258 = sbr.rel (%p256) target = $region24
      $region23: #{simple_mlp_forward.1} parent=11 // pred_region
        _
      $region24: #{simple_mlp_forward.1} parent=11 // pred_fallthru
        _
      // Predicated region
      $region25: #{simple_mlp_forward.1} parent=11 // pred_check
        %p259 = pneg %p125
      $region26: #{simple_mlp_forward.1} parent=11 // pred_check_branch
        %261 = sbr.rel (%p259) target = $region28
      $region27: #{simple_mlp_forward.1} parent=11 // pred_region
        _
      $region28: #{simple_mlp_forward.1} parent=11 // pred_fallthru
        _
      // Predicated region
      $region29: #{simple_mlp_forward.1} parent=11 // pred_check
        %p262 = pneg %p146
      $region30: #{simple_mlp_forward.1} parent=11 // pred_check_branch
        %264 = sbr.rel (%p262) target = $region32
      $region31: #{simple_mlp_forward.1} parent=11 // pred_region
        _
      $region32: #{simple_mlp_forward.1} parent=11 // pred_fallthru
        _
      // Predicated region
      $region33: #{simple_mlp_forward.1} parent=11 // pred_check
        %p265 = pneg %p167
      $region34: #{simple_mlp_forward.1} parent=11 // pred_check_branch
        %267 = sbr.rel (%p265) target = $region36
      $region35: #{simple_mlp_forward.1} parent=11 // pred_region
        _
      $region36: #{simple_mlp_forward.1} parent=11 // pred_fallthru
        _
      // Predicated region
      $region37: #{simple_mlp_forward.1} parent=11 // pred_check
        %p268 = pneg %p188
      $region38: #{simple_mlp_forward.1} parent=11 // pred_check_branch
        %270 = sbr.rel (%p268) target = $region40
      $region39: #{simple_mlp_forward.1} parent=11 // pred_region
        _
      $region40: #{simple_mlp_forward.1} parent=11 // pred_fallthru
        _
      // Predicated region
      $region41: #{simple_mlp_forward.1} parent=11 // pred_check
        %p271 = pneg %p209
      $region42: #{simple_mlp_forward.1} parent=11 // pred_check_branch
        %273 = sbr.rel (%p271) target = $region44
      $region43: #{simple_mlp_forward.1} parent=11 // pred_region
        _
      $region44: #{simple_mlp_forward.1} parent=11 // pred_fallthru
        _
    $region12: #{simple_mlp_forward.1} parent=5 // pred_fallthru
      _
    %p274 = scmp.lt.s32.totalorder %s15, 8
    // Predicated region
    $region45: #{simple_mlp_forward.1} parent=5 // pred_check
      %p275 = pneg %p274
    $region46: #{simple_mlp_forward.1} parent=5 // pred_check_branch
      %277 = sbr.rel (%p275) target = $region48
    $region47: #{simple_mlp_forward.1} parent=5 // pred_region
      // Predicated region
      $region49: #{simple_mlp_forward.1} parent=47 // pred_check
        %p278 = pneg %p35
      $region50: #{simple_mlp_forward.1} parent=47 // pred_check_branch
        %280 = sbr.rel (%p278) target = $region52
      $region51: #{simple_mlp_forward.1} parent=47 // pred_region
        %s281 = smul.u32 4, %s15
        %p282 = scmp.lt.s32.totalorder %s281, 31
        %s283 = scalar_select %p282, %s281, 31
        %s284 = smul.addr %s283, 8
        %s285 = scalar_lea.vmem %s0, %s284
        %s286 = smul.u32 4, %s15
      $region52: #{simple_mlp_forward.1} parent=47 // pred_fallthru
        _
    $region48: #{simple_mlp_forward.1} parent=5 // pred_fallthru
      _
    %p287 = scmp.le.s32.totalorder 1, %s15
    %p288 = scmp.lt.s32.totalorder %s15, 9
    %p289 = pnand %p287, %p288
    %p290 = pneg %p289
    // Predicated region
    $region53: #{simple_mlp_forward.1} parent=5 // pred_check
      _
    $region54: #{simple_mlp_forward.1} parent=5 // pred_check_branch
      %292 = sbr.rel (%p289) target = $region56
    $region55: #{simple_mlp_forward.1} parent=5 // pred_region
      %s293 = ssub.s32 %s15, 1
      %s294 = smul.u32 4, %s20
      %p295 = scmp.lt.s32.totalorder %s294, 31
      %s296 = scalar_select %p295, %s294, 31
      %s297 = smul.addr %s296, 8
      %s298 = scalar_lea.vmem %s0, %s297
      %p299 = pneg %p41
      %p300 = pneg %p38
      %p301 = pneg %p62
      %p302 = pneg %p59
      %p303 = pneg %p83
      %p304 = pneg %p80
      %p305 = pneg %p104
      %p306 = pneg %p101
      %p307 = pneg %p125
      %p308 = pneg %p122
      %p309 = pneg %p146
      %p310 = pneg %p143
      %p311 = pneg %p167
      %p312 = pneg %p164
      %p313 = pneg %p188
      %p314 = pneg %p185
      %p315 = pneg %p209
      %p316 = pneg %p206
      %p317 = pneg %p235
      %p318 = pneg %p232
      %s319 = smul.u32 4, %s20
      %p320 = scmp.lt.s32.totalorder %s319, 31
      %s321 = scalar_select %p320, %s319, 31
      %s322 = smul.addr %s321, 8
      %s323 = scalar_lea.vmem %s9, %s322
      %s324 = smul.u32 4, %s20
      %p325 = scmp.lt.s32.totalorder %s324, 31
      %s326 = scalar_select %p325, %s324, 31
      %s327 = smul.addr %s326, 8
      %s328 = scalar_lea.vmem %s0, %s327
      %s329 = smul.u32 4, %s20
      %s330 = smul.u32 4, %s20
      %p331 = scmp.lt.s32.totalorder %s330, 31
      %s332 = scalar_select %p331, %s330, 31
      %s333 = smul.addr %s332, 8
      %s334 = scalar_lea.vmem %s9, %s333
      %s335 = smul.u32 4, %s20
      %v337 = vld [vmem:[%s328] sm:$0xff]
      %v338 = vld [vmem:[%s328 + $0x8] sm:$0xff]
      %v339 = vld [vmem:[%s328 + $0x10] sm:$0xff]
      %v340 = vld [vmem:[%s328 + $0x18] sm:$0xff]
      %v341 = vpack.c.bf16 %v338, %v337
      %v342 = vpack.c.bf16 %v340, %v339
      %v343 = vld [vmem:[%s1] sm:$0xf]
      %v344 = vld [vmem:[%s1 + $0x4] sm:$0xf]
      %v345 = vld [vmem:[%s2] sm:$0x1]
      %v347 = vlaneseq
      %v348 = vshrl.u32 %v347, 7
      %v349 = vsub.s32 0, %v348
      %v350 = vrot.slane %v345, %v349
      %v354 = vunpack.c.l.b16 %v343
      %v355 = vunpack.c.l.b16 %v344
      %v356 = vpack.c.b16 %v355, %v354
      %vm358 = vcmask 130048
      %v360 = vsel %vm358, %v341, 0
      %v363 = vsel %vm358, %v342, 0
      %365 = vmatprep.subr.bf16.mxu0 0
      %366 = vmatpush1.bf16.msra.mxu0 %v356
      %367 = vmatprep.subr.bf16.mxu0 0
      %368 = vmatpush1.bf16.msra.mxu0 0
      %369 = vmatprep.subr.bf16.mxu0 0
      %370 = vmatpush1.bf16.msra.mxu0 0
      %371 = vmatprep.subr.bf16.mxu0 0
      %372 = vmatpush1.bf16.msra.mxu0 0
      %373 = vmatprep.subr.bf16.mxu0 0
      %374 = vmatpush1.bf16.msra.mxu0 0
      %375 = vmatprep.subr.bf16.mxu0 0
      %376 = vmatpush1.bf16.msra.mxu0 0
      %377 = vmatprep.subr.bf16.mxu0 0
      %378 = vmatpush1.bf16.msra.mxu0 0
      %379 = vmatprep.subr.bf16.mxu0 0
      %380 = vmatpush1.bf16.msra.mxu0 0
      %381 = vmatprep.subr.bf16.mxu0 0
      %382 = vmatpush1.bf16.msra.mxu0 0
      %383 = vmatprep.subr.bf16.mxu0 0
      %384 = vmatpush1.bf16.msra.mxu0 0
      %385 = vmatprep.subr.bf16.mxu0 0
      %386 = vmatpush1.bf16.msra.mxu0 0
      %387 = vmatprep.subr.bf16.mxu0 0
      %388 = vmatpush1.bf16.msra.mxu0 0
      %389 = vmatprep.subr.bf16.mxu0 0
      %390 = vmatpush1.bf16.msra.mxu0 0
      %391 = vmatprep.subr.bf16.mxu0 0
      %392 = vmatpush1.bf16.msra.mxu0 0
      %393 = vmatprep.subr.bf16.mxu0 0
      %394 = vmatpush1.bf16.msra.mxu0 0
      %395 = vmatprep.subr.bf16.mxu0 0
      %396 = vmatpush1.bf16.msra.mxu0 0
      %397 = vmatprep.mubr.bf16.mxu0 0
      %398 = vmatmul.mubr.bf16.gmra.mrb[0].mxu0 %v360
      %v399 = vpop.f32.mrb[0].mxu0
      %v400 = vadd.f32 %v350, %v399
      %v401 = vpop.f32.mrb[0].mxu0
      %v402 = vpop.f32.mrb[0].mxu0
      %v403 = vadd.f32 %v350, %v402
      %v404 = vpop.f32.mrb[0].mxu0
      %405 = vmatprep.mubr.bf16.mxu0 0
      %406 = vmatmul.mubr.bf16.gmra.mrb[0].mxu0 %v363
      %v407 = vpop.f32.mrb[0].mxu0
      %v408 = vadd.f32 %v350, %v407
      %v409 = vpop.f32.mrb[0].mxu0
      %v410 = vpop.f32.mrb[0].mxu0
      %v411 = vadd.f32 %v350, %v410
      %v412 = vpop.f32.mrb[0].mxu0
      %413 = vdwg.mxu0
      %v414 = vmax.f32 %v400, 0.0
      %v415 = vmax.f32 %v403, 0.0
      %v416 = vmax.f32 %v408, 0.0
      %v417 = vmax.f32 %v411, 0.0
      %v418 = vpack.c.bf16 %v415, %v414
      %v419 = vpack.c.bf16 %v417, %v416
      %v420 = vld [vmem:[%s3] sm:$0xf]
      %v421 = vld [vmem:[%s3 + $0x4] sm:$0xf]
      %v422 = vld [vmem:[%s3 + $0x8] sm:$0xf]
      %v423 = vld [vmem:[%s3 + $0xc] sm:$0xf]
      %v424 = vld [vmem:[%s3 + $0x10] sm:$0xf]
      %v425 = vld [vmem:[%s3 + $0x14] sm:$0xf]
      %v426 = vld [vmem:[%s3 + $0x18] sm:$0xf]
      %v427 = vld [vmem:[%s3 + $0x1c] sm:$0xf]
      %v428 = vld [vmem:[%s3 + $0x20] sm:$0xf]
      %v429 = vld [vmem:[%s3 + $0x24] sm:$0xf]
      %v430 = vld [vmem:[%s3 + $0x28] sm:$0xf]
      %v431 = vld [vmem:[%s3 + $0x2c] sm:$0xf]
      %v432 = vld [vmem:[%s3 + $0x30] sm:$0xf]
      %v433 = vld [vmem:[%s3 + $0x34] sm:$0xf]
      %v434 = vld [vmem:[%s3 + $0x38] sm:$0xf]
      %v435 = vld [vmem:[%s3 + $0x3c] sm:$0xf]
      %v436 = vld [vmem:[%s4] sm:$0x1]
      %v438 = vlaneseq
      %v439 = vshrl.u32 %v438, 7
      %v440 = vsub.s32 0, %v439
      %v441 = vrot.slane %v436, %v440
      %v459 = vunpack.c.l.b16 %v420
      %v460 = vunpack.c.l.b16 %v421
      %v461 = vunpack.c.l.b16 %v422
      %v462 = vunpack.c.l.b16 %v423
      %v463 = vunpack.c.l.b16 %v424
      %v464 = vunpack.c.l.b16 %v425
      %v465 = vunpack.c.l.b16 %v426
      %v466 = vunpack.c.l.b16 %v427
      %v467 = vunpack.c.l.b16 %v428
      %v468 = vunpack.c.l.b16 %v429
      %v469 = vunpack.c.l.b16 %v430
      %v470 = vunpack.c.l.b16 %v431
      %v471 = vunpack.c.l.b16 %v432
      %v472 = vunpack.c.l.b16 %v433
      %v473 = vunpack.c.l.b16 %v434
      %v474 = vunpack.c.l.b16 %v435
      %v475 = vpack.c.b16 %v460, %v459
      %v476 = vpack.c.b16 %v462, %v461
      %v477 = vpack.c.b16 %v464, %v463
      %v478 = vpack.c.b16 %v466, %v465
      %v479 = vpack.c.b16 %v468, %v467
      %v480 = vpack.c.b16 %v470, %v469
      %v481 = vpack.c.b16 %v472, %v471
      %v482 = vpack.c.b16 %v474, %v473
      %491 = vmatprep.subr.bf16.mxu0 0
      %492 = vmatpush1.bf16.msra.mxu0 %v475
      %493 = vmatprep.subr.bf16.mxu0 0
      %494 = vmatpush1.bf16.msra.mxu0 %v476
      %495 = vmatprep.subr.bf16.mxu0 0
      %496 = vmatpush1.bf16.msra.mxu0 %v477
      %497 = vmatprep.subr.bf16.mxu0 0
      %498 = vmatpush1.bf16.msra.mxu0 %v478
      %499 = vmatprep.subr.bf16.mxu0 0
      %500 = vmatpush1.bf16.msra.mxu0 %v479
      %501 = vmatprep.subr.bf16.mxu0 0
      %502 = vmatpush1.bf16.msra.mxu0 %v480
      %503 = vmatprep.subr.bf16.mxu0 0
      %504 = vmatpush1.bf16.msra.mxu0 %v481
      %505 = vmatprep.subr.bf16.mxu0 0
      %506 = vmatpush1.bf16.msra.mxu0 %v482
      %507 = vmatprep.subr.bf16.mxu0 0
      %508 = vmatpush1.bf16.msra.mxu0 0
      %509 = vmatprep.subr.bf16.mxu0 0
      %510 = vmatpush1.bf16.msra.mxu0 0
      %511 = vmatprep.subr.bf16.mxu0 0
      %512 = vmatpush1.bf16.msra.mxu0 0
      %513 = vmatprep.subr.bf16.mxu0 0
      %514 = vmatpush1.bf16.msra.mxu0 0
      %515 = vmatprep.subr.bf16.mxu0 0
      %516 = vmatpush1.bf16.msra.mxu0 0
      %517 = vmatprep.subr.bf16.mxu0 0
      %518 = vmatpush1.bf16.msra.mxu0 0
      %519 = vmatprep.subr.bf16.mxu0 0
      %520 = vmatpush1.bf16.msra.mxu0 0
      %521 = vmatprep.subr.bf16.mxu0 0
      %522 = vmatpush1.bf16.msra.mxu0 0
      %523 = vmatprep.mubr.bf16.mxu0 0
      %524 = vmatmul.mubr.bf16.gmra.mrb[0].mxu0 %v418
      %v525 = vpop.f32.mrb[0].mxu0
      %v526 = vadd.f32 %v441, %v525
      %v527 = vpop.f32.mrb[0].mxu0
      %v528 = vpop.f32.mrb[0].mxu0
      %v529 = vadd.f32 %v441, %v528
      %v530 = vpop.f32.mrb[0].mxu0
      %531 = vmatprep.mubr.bf16.mxu0 0
      %532 = vmatmul.mubr.bf16.gmra.mrb[0].mxu0 %v419
      %v533 = vpop.f32.mrb[0].mxu0
      %v534 = vadd.f32 %v441, %v533
      %v535 = vpop.f32.mrb[0].mxu0
      %v536 = vpop.f32.mrb[0].mxu0
      %v537 = vadd.f32 %v441, %v536
      %v538 = vpop.f32.mrb[0].mxu0
      %539 = vdwg.mxu0
      %v540 = vmax.f32 %v526, 0.0
      %v541 = vmax.f32 %v529, 0.0
      %v542 = vmax.f32 %v534, 0.0
      %v543 = vmax.f32 %v537, 0.0
      %v544 = vpack.c.bf16 %v541, %v540
      %v545 = vpack.c.bf16 %v543, %v542
      %v546 = vld [vmem:[%s5] sm:$0xf]
      %v547 = vld [vmem:[%s5 + $0x4] sm:$0xf]
      %v548 = vld [vmem:[%s5 + $0x8] sm:$0xf]
      %v549 = vld [vmem:[%s5 + $0xc] sm:$0xf]
      %v550 = vld [vmem:[%s5 + $0x10] sm:$0xf]
      %v551 = vld [vmem:[%s5 + $0x14] sm:$0xf]
      %v552 = vld [vmem:[%s5 + $0x18] sm:$0xf]
      %v553 = vld [vmem:[%s5 + $0x1c] sm:$0xf]
      %v554 = vld [vmem:[%s5 + $0x20] sm:$0xf]
      %v555 = vld [vmem:[%s5 + $0x24] sm:$0xf]
      %v556 = vld [vmem:[%s5 + $0x28] sm:$0xf]
      %v557 = vld [vmem:[%s5 + $0x2c] sm:$0xf]
      %v558 = vld [vmem:[%s5 + $0x30] sm:$0xf]
      %v559 = vld [vmem:[%s5 + $0x34] sm:$0xf]
      %v560 = vld [vmem:[%s5 + $0x38] sm:$0xf]
      %v561 = vld [vmem:[%s5 + $0x3c] sm:$0xf]
      %v562 = vld [vmem:[%s6] sm:$0x1]
      %v564 = vlaneseq
      %v565 = vshrl.u32 %v564, 7
      %v566 = vsub.s32 0, %v565
      %v567 = vrot.slane %v562, %v566
      %v585 = vunpack.c.l.b16 %v546
      %v586 = vunpack.c.l.b16 %v547
      %v587 = vunpack.c.l.b16 %v548
      %v588 = vunpack.c.l.b16 %v549
      %v589 = vunpack.c.l.b16 %v550
      %v590 = vunpack.c.l.b16 %v551
      %v591 = vunpack.c.l.b16 %v552
      %v592 = vunpack.c.l.b16 %v553
      %v593 = vunpack.c.l.b16 %v554
      %v594 = vunpack.c.l.b16 %v555
      %v595 = vunpack.c.l.b16 %v556
      %v596 = vunpack.c.l.b16 %v557
      %v597 = vunpack.c.l.b16 %v558
      %v598 = vunpack.c.l.b16 %v559
      %v599 = vunpack.c.l.b16 %v560
      %v600 = vunpack.c.l.b16 %v561
      %v601 = vpack.c.b16 %v586, %v585
      %v602 = vpack.c.b16 %v588, %v587
      %v603 = vpack.c.b16 %v590, %v589
      %v604 = vpack.c.b16 %v592, %v591
      %v605 = vpack.c.b16 %v594, %v593
      %v606 = vpack.c.b16 %v596, %v595
      %v607 = vpack.c.b16 %v598, %v597
      %v608 = vpack.c.b16 %v600, %v599
      %617 = vmatprep.subr.bf16.mxu0 0
      %618 = vmatpush1.bf16.msra.mxu0 %v601
      %619 = vmatprep.subr.bf16.mxu0 0
      %620 = vmatpush1.bf16.msra.mxu0 %v602
      %621 = vmatprep.subr.bf16.mxu0 0
      %622 = vmatpush1.bf16.msra.mxu0 %v603
      %623 = vmatprep.subr.bf16.mxu0 0
      %624 = vmatpush1.bf16.msra.mxu0 %v604
      %625 = vmatprep.subr.bf16.mxu0 0
      %626 = vmatpush1.bf16.msra.mxu0 %v605
      %627 = vmatprep.subr.bf16.mxu0 0
      %628 = vmatpush1.bf16.msra.mxu0 %v606
      %629 = vmatprep.subr.bf16.mxu0 0
      %630 = vmatpush1.bf16.msra.mxu0 %v607
      %631 = vmatprep.subr.bf16.mxu0 0
      %632 = vmatpush1.bf16.msra.mxu0 %v608
      %633 = vmatprep.subr.bf16.mxu0 0
      %634 = vmatpush1.bf16.msra.mxu0 0
      %635 = vmatprep.subr.bf16.mxu0 0
      %636 = vmatpush1.bf16.msra.mxu0 0
      %637 = vmatprep.subr.bf16.mxu0 0
      %638 = vmatpush1.bf16.msra.mxu0 0
      %639 = vmatprep.subr.bf16.mxu0 0
      %640 = vmatpush1.bf16.msra.mxu0 0
      %641 = vmatprep.subr.bf16.mxu0 0
      %642 = vmatpush1.bf16.msra.mxu0 0
      %643 = vmatprep.subr.bf16.mxu0 0
      %644 = vmatpush1.bf16.msra.mxu0 0
      %645 = vmatprep.subr.bf16.mxu0 0
      %646 = vmatpush1.bf16.msra.mxu0 0
      %647 = vmatprep.subr.bf16.mxu0 0
      %648 = vmatpush1.bf16.msra.mxu0 0
      %649 = vmatprep.mubr.bf16.mxu0 0
      %650 = vmatmul.mubr.bf16.gmra.mrb[0].mxu0 %v544
      %v651 = vpop.f32.mrb[0].mxu0
      %v652 = vadd.f32 %v567, %v651
      %v653 = vpop.f32.mrb[0].mxu0
      %v654 = vpop.f32.mrb[0].mxu0
      %v655 = vadd.f32 %v567, %v654
      %v656 = vpop.f32.mrb[0].mxu0
      %657 = vmatprep.mubr.bf16.mxu0 0
      %658 = vmatmul.mubr.bf16.gmra.mrb[0].mxu0 %v545
      %v659 = vpop.f32.mrb[0].mxu0
      %v660 = vadd.f32 %v567, %v659
      %v661 = vpop.f32.mrb[0].mxu0
      %v662 = vpop.f32.mrb[0].mxu0
      %v663 = vadd.f32 %v567, %v662
      %v664 = vpop.f32.mrb[0].mxu0
      %665 = vdwg.mxu0
      %v666 = vmax.f32 %v652, 0.0
      %v667 = vmax.f32 %v655, 0.0
      %v668 = vmax.f32 %v660, 0.0
      %v669 = vmax.f32 %v663, 0.0
      %v670 = vpack.c.bf16 %v667, %v666
      %v671 = vpack.c.bf16 %v669, %v668
      %v672 = vld [vmem:[%s7] sm:$0xf]
      %v673 = vld [vmem:[%s7 + $0x4] sm:$0xf]
      %v674 = vld [vmem:[%s7 + $0x8] sm:$0xf]
      %v675 = vld [vmem:[%s7 + $0xc] sm:$0xf]
      %v676 = vld [vmem:[%s7 + $0x10] sm:$0xf]
      %v677 = vld [vmem:[%s7 + $0x14] sm:$0xf]
      %v678 = vld [vmem:[%s7 + $0x18] sm:$0xf]
      %v679 = vld [vmem:[%s7 + $0x1c] sm:$0xf]
      %v680 = vld [vmem:[%s7 + $0x20] sm:$0xf]
      %v681 = vld [vmem:[%s7 + $0x24] sm:$0xf]
      %v682 = vld [vmem:[%s7 + $0x28] sm:$0xf]
      %v683 = vld [vmem:[%s7 + $0x2c] sm:$0xf]
      %v684 = vld [vmem:[%s7 + $0x30] sm:$0xf]
      %v685 = vld [vmem:[%s7 + $0x34] sm:$0xf]
      %v686 = vld [vmem:[%s7 + $0x38] sm:$0xf]
      %v687 = vld [vmem:[%s7 + $0x3c] sm:$0xf]
      %v688 = vld [vmem:[%s8] sm:$0x1]
      %v690 = vlaneseq
      %v691 = vshrl.u32 %v690, 7
      %v692 = vsub.s32 0, %v691
      %v693 = vrot.slane %v688, %v692
      %v711 = vunpack.c.l.b16 %v672
      %v712 = vunpack.c.l.b16 %v673
      %v713 = vunpack.c.l.b16 %v674
      %v714 = vunpack.c.l.b16 %v675
      %v715 = vunpack.c.l.b16 %v676
      %v716 = vunpack.c.l.b16 %v677
      %v717 = vunpack.c.l.b16 %v678
      %v718 = vunpack.c.l.b16 %v679
      %v719 = vunpack.c.l.b16 %v680
      %v720 = vunpack.c.l.b16 %v681
      %v721 = vunpack.c.l.b16 %v682
      %v722 = vunpack.c.l.b16 %v683
      %v723 = vunpack.c.l.b16 %v684
      %v724 = vunpack.c.l.b16 %v685
      %v725 = vunpack.c.l.b16 %v686
      %v726 = vunpack.c.l.b16 %v687
      %v727 = vpack.c.b16 %v712, %v711
      %v728 = vpack.c.b16 %v714, %v713
      %v729 = vpack.c.b16 %v716, %v715
      %v730 = vpack.c.b16 %v718, %v717
      %v731 = vpack.c.b16 %v720, %v719
      %v732 = vpack.c.b16 %v722, %v721
      %v733 = vpack.c.b16 %v724, %v723
      %v734 = vpack.c.b16 %v726, %v725
      %743 = vmatprep.subr.bf16.mxu0 0
      %744 = vmatpush1.bf16.msra.mxu0 %v727
      %745 = vmatprep.subr.bf16.mxu0 0
      %746 = vmatpush1.bf16.msra.mxu0 %v728
      %747 = vmatprep.subr.bf16.mxu0 0
      %748 = vmatpush1.bf16.msra.mxu0 %v729
      %749 = vmatprep.subr.bf16.mxu0 0
      %750 = vmatpush1.bf16.msra.mxu0 %v730
      %751 = vmatprep.subr.bf16.mxu0 0
      %752 = vmatpush1.bf16.msra.mxu0 %v731
      %753 = vmatprep.subr.bf16.mxu0 0
      %754 = vmatpush1.bf16.msra.mxu0 %v732
      %755 = vmatprep.subr.bf16.mxu0 0
      %756 = vmatpush1.bf16.msra.mxu0 %v733
      %757 = vmatprep.subr.bf16.mxu0 0
      %758 = vmatpush1.bf16.msra.mxu0 %v734
      %759 = vmatprep.subr.bf16.mxu0 0
      %760 = vmatpush1.bf16.msra.mxu0 0
      %761 = vmatprep.subr.bf16.mxu0 0
      %762 = vmatpush1.bf16.msra.mxu0 0
      %763 = vmatprep.subr.bf16.mxu0 0
      %764 = vmatpush1.bf16.msra.mxu0 0
      %765 = vmatprep.subr.bf16.mxu0 0
      %766 = vmatpush1.bf16.msra.mxu0 0
      %767 = vmatprep.subr.bf16.mxu0 0
      %768 = vmatpush1.bf16.msra.mxu0 0
      %769 = vmatprep.subr.bf16.mxu0 0
      %770 = vmatpush1.bf16.msra.mxu0 0
      %771 = vmatprep.subr.bf16.mxu0 0
      %772 = vmatpush1.bf16.msra.mxu0 0
      %773 = vmatprep.subr.bf16.mxu0 0
      %774 = vmatpush1.bf16.msra.mxu0 0
      %775 = vmatprep.mubr.bf16.mxu0 0
      %776 = vmatmul.mubr.bf16.gmra.mrb[0].mxu0 %v670
      %v777 = vpop.f32.mrb[0].mxu0
      %v778 = vadd.f32 %v693, %v777
      %v779 = vpop.f32.mrb[0].mxu0
      %v780 = vpop.f32.mrb[0].mxu0
      %v781 = vadd.f32 %v693, %v780
      %v782 = vpop.f32.mrb[0].mxu0
      %783 = vmatprep.mubr.bf16.mxu0 0
      %784 = vmatmul.mubr.bf16.gmra.mrb[0].mxu0 %v671
      %v785 = vpop.f32.mrb[0].mxu0
      %v786 = vadd.f32 %v693, %v785
      %v787 = vpop.f32.mrb[0].mxu0
      %v788 = vpop.f32.mrb[0].mxu0
      %v789 = vadd.f32 %v693, %v788
      %v790 = vpop.f32.mrb[0].mxu0
      %791 = vdwg.mxu0
      %vm792 = vcmask 31744
      %793 = vst.msk [vmem:[%s334] sm:$0xff] %vm792, %v778
      %794 = vst.msk [vmem:[%s334 + $0x8] sm:$0xff] %vm792, %v781
      %795 = vst.msk [vmem:[%s334 + $0x10] sm:$0xff] %vm792, %v786
      %796 = vst.msk [vmem:[%s334 + $0x18] sm:$0xff] %vm792, %v789
      %s797 = smul.u32 4, %s20
      %p798 = scmp.lt.s32.totalorder %s797, 31
      %s799 = scalar_select %p798, %s797, 31
      %s800 = smul.addr %s799, 8
      %s801 = scalar_lea.vmem %s9, %s800
      // Predicated region
      $region57: #{simple_mlp_forward.1} parent=55 // pred_check
        %p802 = pneg %p232
      $region58: #{simple_mlp_forward.1} parent=55 // pred_check_branch
        %804 = sbr.rel (%p802) target = $region60
      $region59: #{simple_mlp_forward.1} parent=55 // pred_region
        %s805 = smul.u32 4, %s20
      $region60: #{simple_mlp_forward.1} parent=55 // pred_fallthru
        _
    $region56: #{simple_mlp_forward.1} parent=5 // pred_fallthru
      _
    %p806 = scmp.le.s32.totalorder 2, %s15
    // Predicated region
    $region61: #{simple_mlp_forward.1} parent=5 // pred_check
      %p807 = pneg %p806
    $region62: #{simple_mlp_forward.1} parent=5 // pred_check_branch
      %809 = sbr.rel (%p807) target = $region64
    $region63: #{simple_mlp_forward.1} parent=5 // pred_region
      %s810 = ssub.s32 %s15, 2
      // Predicated region
      $region65: #{simple_mlp_forward.1} parent=63 // pred_check
        %p811 = pneg %p238
      $region66: #{simple_mlp_forward.1} parent=63 // pred_check_branch
        %813 = sbr.rel (%p811) target = $region68
      $region67: #{simple_mlp_forward.1} parent=63 // pred_region
        %s814 = smul.u32 4, %s21
        %p815 = scmp.lt.s32.totalorder %s814, 31
        %s816 = scalar_select %p815, %s814, 31
        %s817 = smul.addr %s816, 8
        %s818 = scalar_lea.vmem %s9, %s817
      $region68: #{simple_mlp_forward.1} parent=63 // pred_fallthru
        _
    $region64: #{simple_mlp_forward.1} parent=5 // pred_fallthru
      _
  $region6: #{simple_mlp_forward.1} parent=0 // loop_footer
    %s19 = sadd.s32 1, %s15
  $region7: #{simple_mlp_forward.1} parent=0 // loop_footer_branch
    %14 = sbr.rel target = $region3
  $region8: #{simple_mlp_forward.1} parent=0 // loop_exit
    _

</llo_original>
